<compile_context>
chip_gen: v5e
topology: v5e:2x2
jax: 0.10.0
libtpu: 0.0.40
codegen_flags: <defaults>
</compile_context>

<pallas_src>
import jax
import jax.numpy as jnp
from jax.experimental import pallas as pl
from jax.experimental.pallas import tpu as pltpu


def _round_up(x, m):
    return (x + m - 1) // m * m


def _vmem_capacity_bytes():
    # Generation-aware budgets (v5e/v6e: 128 MiB physical, v7x: 64 MiB).
    # Conservative default if the query is unavailable.
    try:
        return int(pltpu.get_tpu_info().vmem_capacity_bytes)
    except Exception:
        return 64 * 1024 * 1024


# ----------------------------------------------------------------------------
# Pallas kernel: one (batch, spatial-tile) grid step of a 3x3 / stride-2 /
# pad-1 conv + bias + ReLU, expressed as a single K = 9*Cin GEMM.
#
#   x_ref: (1, K, TM)    bf16  packed im2col taps; lane dim = spatial (dense)
#   w_ref: (Cout, K)     bf16  transposed weight matrix
#   b_ref: (Cout, 1)     f32   bias
#   o_ref: (1, Cout, TM) f32   NCHW-flattened output tile; lane dim = spatial
# ----------------------------------------------------------------------------
def _conv3x3s2_gemm_kernel(x_ref, w_ref, b_ref, o_ref):
    acc = jnp.dot(w_ref[...], x_ref[0],
                  preferred_element_type=jnp.float32)     # (Cout, TM) f32
    acc = acc + b_ref[...]                                # f32 bias broadcast
    o_ref[0] = jnp.maximum(acc, 0.0).astype(o_ref.dtype)


# ----------------------------------------------------------------------------
# Plain-XLA fallback (tiny deep stages, ragged sizes) and numerical reference.
# ----------------------------------------------------------------------------
def _conv3x3_s2_relu_lax(x_nchw, w, b):
    out = jax.lax.conv_general_dilated(
        x_nchw.astype(jnp.float32), w.astype(jnp.float32),
        window_strides=(2, 2), padding=((1, 1), (1, 1)),
        dimension_numbers=("NCHW", "HWIO", "NCHW"),
        precision=jax.lax.Precision.HIGHEST)
    return jnp.maximum(out + b.astype(jnp.float32).reshape(1, -1, 1, 1), 0.0)


_TM_TARGET = 1024            # review: grow M; MXU is starved by tiny K/N
_ACC_BYTES_CAP = 128 * 1024  # keep the (Cout, TM) f32 result tile vreg-sized


def _pick_tile_chunks(nt_chunks, batch, cout):
    """TM in 128-lane chunks: biggest tile under the accumulator/target caps
    that still leaves >= 4 grid steps when possible (v7x megacore balance)."""
    cap = max(1, min(_TM_TARGET // 128, _ACC_BYTES_CAP // (4 * cout * 128)))
    hi = min(nt_chunks, cap)
    divs = [d for d in range(1, hi + 1) if nt_chunks % d == 0]
    if not divs:
        divs = [1]
    t = max(divs)
    balanced = [d for d in divs if batch * (nt_chunks // d) >= 4]
    if balanced:
        t = max(balanced)
    return t


def conv3x3_s2_relu_nchw(x_nchw, w, b):
    """3x3 conv, stride 2, padding 1, + bias + ReLU.  x_nchw: (B, Cin, H, W),
    w: (3, 3, Cin, Cout) HWIO, b: (Cout,).  Returns (B, Cout, Ho, Wo) f32."""
    B, Cin, H, W = x_nchw.shape
    Cout = w.shape[-1]
    Ho = (H - 1) // 2 + 1
    Wo = (W - 1) // 2 + 1
    M = Ho * Wo
    K = 9 * Cin

    vmem_cap = _vmem_capacity_bytes()

    use_pallas = (M >= 256) and (M % 128 == 0)
    if use_pallas:
        TM = 128 * _pick_tile_chunks(M // 128, B, Cout)
        # Per-grid-step VMEM, x2 for BlockSpec double-buffering (review item).
        in_blk = _round_up(K, 16) * TM * 2                 # bf16
        out_blk = _round_up(Cout, 8) * TM * 4              # f32
        w_blk = _round_up(Cout, 16) * _round_up(K, 128) * 2
        b_blk = _round_up(Cout, 8) * 128 * 4
        vmem_needed = 2 * (in_blk + out_blk + w_blk + b_blk)
        use_pallas = vmem_needed <= (vmem_cap // 2)

    if not use_pallas:
        # TODO(synk): ragged spatial sizes (M % 128 != 0) would need masked
        # edge tiles; tiny deep stages are pure launch overhead in Pallas.
        return _conv3x3_s2_relu_lax(x_nchw, w, b)

    # ---- wrapper-side tap packing: (B, 9*Cin, Ho*Wo) bf16, tap-major K ----
    xb = x_nchw.astype(jnp.bfloat16)
    xp = jnp.pad(xb, ((0, 0), (0, 0), (1, 1), (1, 1)))
    taps = [xp[:, :, kh:kh + 2 * Ho:2, kw:kw + 2 * Wo:2]
            for kh in range(3) for kw in range(3)]          # 9 x (B,Cin,Ho,Wo)
    packed = jnp.stack(taps, axis=1).reshape(B, K, M)       # (B, 9*Cin, M)

    w_t = jnp.transpose(w.reshape(K, Cout)).astype(jnp.bfloat16)  # (Cout, K)
    bias = b.reshape(Cout, 1).astype(jnp.float32)

    grid = (B, M // TM)
    cost = pl.CostEstimate(
        flops=2 * B * M * K * Cout,
        transcendentals=0,
        bytes_accessed=B * K * M * 2 + K * Cout * 2 + Cout * 4 + B * Cout * M * 4)

    out = pl.pallas_call(
        _conv3x3s2_gemm_kernel,
        out_shape=jax.ShapeDtypeStruct((B, Cout, M), jnp.float32),
        grid=grid,
        in_specs=[
            pl.BlockSpec((1, K, TM), lambda bi, ti: (bi, 0, ti)),
            pl.BlockSpec((Cout, K), lambda bi, ti: (0, 0)),
            pl.BlockSpec((Cout, 1), lambda bi, ti: (0, 0)),
        ],
        out_specs=pl.BlockSpec((1, Cout, TM), lambda bi, ti: (bi, 0, ti)),
        compiler_params=pltpu.CompilerParams(
            dimension_semantics=("parallel", "parallel"),
            vmem_limit_bytes=int(min((3 * vmem_cap) // 4, 100 * 1024 * 1024))),
        cost_estimate=cost,
    )(packed, w_t, bias)

    return out.reshape(B, Cout, Ho, Wo)


# ----------------------------------------------------------------------------
# Encoder (mirrors TimmUniversalEncoder forward semantics)
# ----------------------------------------------------------------------------
class TimmUniversalEncoderPallas:
    """Synthetic stand-in for TimmUniversalEncoder: 5 stride-2 conv stages."""

    STAGE_CHANNELS = [8, 16, 32, 64, 128]

    def __init__(self, in_channels=3, depth=5, output_stride=32,
                 attention=None, seed=0):
        # TODO(synk): SCSE attention branch not implemented.
        assert attention is None
        # TODO(synk): output_stride < 32 (dilated deep stages) not implemented
        # in the synthetic backbone; every stage uses stride 2.
        self._in_channels = in_channels
        self._depth = depth
        self._output_stride = output_stride
        chans = self.STAGE_CHANNELS[:depth]
        self._out_channels = [in_channels] + chans

        # Deterministic synthetic weights (kaiming-like scaling).
        key = jax.random.PRNGKey(seed)
        self.params = []
        cin = in_channels
        for cout in chans:
            key, kw, kb = jax.random.split(key, 3)
            std = (2.0 / (9 * cin)) ** 0.5
            w = std * jax.random.normal(kw, (3, 3, cin, cout), jnp.float32)
            b = 0.01 * jax.random.normal(kb, (cout,), jnp.float32)
            self.params.append((w, b))
            cin = cout

    @property
    def out_channels(self):
        return self._out_channels

    @property
    def output_stride(self):
        return min(self._output_stride, 2 ** self._depth)

    def __call__(self, x_nchw):
        # Entire stage chain stays NCHW: the Pallas kernel writes NCHW
        # directly, so no boundary transposes are needed at all.
        features = [x_nchw]
        h = x_nchw
        for (w, b) in self.params:
            h = conv3x3_s2_relu_nchw(h, w, b)
            features.append(h)
        return features


# ----------------------------------------------------------------------------
if __name__ == "__main__":
    key = jax.random.PRNGKey(0)
    # Small but depth-5-compatible input: 64x64 so the first two stages take
    # the Pallas path and the deepest feature is 2x2.
    x = jax.random.normal(key, (2, 3, 64, 64), jnp.float32)

    encoder = TimmUniversalEncoderPallas(in_channels=3, depth=5)
    fwd = jax.jit(encoder.__call__)
    feats = fwd(x)
    feats = [jax.block_until_ready(f) for f in feats]

    # Shape check: [x] + depth feature maps, strides 1,2,4,8,16,32.
    expected_shapes = [
        (2, 3, 64, 64),
        (2, 8, 32, 32),
        (2, 16, 16, 16),
        (2, 32, 8, 8),
        (2, 64, 4, 4),
        (2, 128, 2, 2),
    ]
    assert len(feats) == len(expected_shapes)
    for f, s in zip(feats, expected_shapes):
        assert tuple(f.shape) == s, (f.shape, s)
    assert encoder.out_channels == [3, 8, 16, 32, 64, 128]
    assert encoder.output_stride == 32

    # Numerical check of the Pallas conv stage against a pure-lax reference
    # evaluated on the same bf16-rounded operands (kernel accumulates in f32,
    # so the remaining difference is summation-order noise).
    w0, b0 = encoder.params[0]
    ref = _conv3x3_s2_relu_lax(
        x.astype(jnp.bfloat16).astype(jnp.float32),
        w0.astype(jnp.bfloat16).astype(jnp.float32), b0)
    got = jax.jit(conv3x3_s2_relu_nchw)(x, w0, b0)
    got = jax.block_until_ready(got)
    err = float(jnp.max(jnp.abs(got - ref)))
    assert err < 2e-3, f"pallas vs lax mismatch: {err}"

    print("KERNEL_OK")
</pallas_src>

<mosaic_0001>
module attributes {stable_mosaic.version = 11 : i64} {
  func.func @_conv3x3s2_gemm_kernel(%arg0: i32, %arg1: i32, %arg2: memref<1x27x512xbf16, #tpu.memory_space<vmem>>, %arg3: memref<8x27xbf16, #tpu.memory_space<vmem>>, %arg4: memref<8x1xf32, #tpu.memory_space<vmem>>, %arg5: memref<1x8x512xf32, #tpu.memory_space<vmem>>) attributes {dimension_semantics = [#tpu.dimension_semantics<parallel>, #tpu.dimension_semantics<parallel>], iteration_bounds = array<i64: 2, 2>, scalar_prefetch = 0 : i64, scratch_operands = 0 : i64, tpu.core_type = #tpu.core_type<tc>, window_params = [{transform_indices = @transform_0, window_bounds = array<i64: 1, 27, 512>}, {pipeline_mode = #tpu.pipeline_mode<synchronous>, transform_indices = @transform_1, window_bounds = array<i64: 8, 27>}, {pipeline_mode = #tpu.pipeline_mode<synchronous>, transform_indices = @transform_2, window_bounds = array<i64: 8, 1>}, {transform_indices = @transform_3, window_bounds = array<i64: 1, 8, 512>}]} {
    %c0 = arith.constant 0 : index
    %c0_0 = arith.constant 0 : index
    %0 = vector.load %arg3[%c0, %c0_0] : memref<8x27xbf16, #tpu.memory_space<vmem>>, vector<8x27xbf16>
    %c0_1 = arith.constant 0 : index
    %c0_2 = arith.constant 0 : index
    %c0_3 = arith.constant 0 : index
    %1 = vector.load %arg2[%c0_1, %c0_2, %c0_3] : memref<1x27x512xbf16, #tpu.memory_space<vmem>>, vector<1x27x512xbf16>
    %2 = vector.shape_cast %1 : vector<1x27x512xbf16> to vector<27x512xbf16>
    %cst = arith.constant dense<0.000000e+00> : vector<8x512xf32>
    %3 = tpu.matmul %0, %2, %cst {dimension_numbers = #tpu.dot_dimension_numbers<[1], [0], [0], [1], [0, 0, 1, 1], [], []>} : vector<8x27xbf16>, vector<27x512xbf16>, vector<8x512xf32> -> vector<8x512xf32>
    %c0_4 = arith.constant 0 : index
    %c0_5 = arith.constant 0 : index
    %4 = vector.load %arg4[%c0_4, %c0_5] : memref<8x1xf32, #tpu.memory_space<vmem>>, vector<8x1xf32>
    %5 = vector.broadcast %4 : vector<8x1xf32> to vector<8x512xf32>
    %6 = arith.addf %3, %5 : vector<8x512xf32>
    %cst_6 = arith.constant 0.000000e+00 : f32
    %7 = vector.broadcast %cst_6 : f32 to vector<8x512xf32>
    %8 = arith.maximumf %6, %7 : vector<8x512xf32>
    %c0_7 = arith.constant 0 : index
    %c0_8 = arith.constant 0 : index
    %c0_9 = arith.constant 0 : index
    %9 = vector.load %arg5[%c0_7, %c0_8, %c0_9] : memref<1x8x512xf32, #tpu.memory_space<vmem>>, vector<1x8x512xf32>
    %10 = vector.shape_cast %9 : vector<1x8x512xf32> to vector<8x512xf32>
    %11 = vector.shape_cast %8 : vector<8x512xf32> to vector<1x8x512xf32>
    tpu.vector_store %arg5[%c0_7, %c0_8, %c0_9], %11 {strides = array<i32>} : memref<1x8x512xf32, #tpu.memory_space<vmem>>, vector<1x8x512xf32>,
    return
  }
  func.func @transform_0(%arg0: i32, %arg1: i32) -> (i32, i32, i32) {
    %c0_i32 = arith.constant 0 : i32
    %c0_i32_0 = arith.constant 0 : i32
    return %arg0, %c0_i32, %arg1 : i32, i32, i32
  }
  func.func @transform_1(%arg0: i32, %arg1: i32) -> (i32, i32) {
    %c0_i32 = arith.constant 0 : i32
    %c0_i32_0 = arith.constant 0 : i32
    %c0_i32_1 = arith.constant 0 : i32
    return %c0_i32, %c0_i32_0 : i32, i32
  }
  func.func @transform_2(%arg0: i32, %arg1: i32) -> (i32, i32) {
    %c0_i32 = arith.constant 0 : i32
    %c0_i32_0 = arith.constant 0 : i32
    %c0_i32_1 = arith.constant 0 : i32
    return %c0_i32, %c0_i32_0 : i32, i32
  }
  func.func @transform_3(%arg0: i32, %arg1: i32) -> (i32, i32, i32) {
    %c0_i32 = arith.constant 0 : i32
    %c0_i32_0 = arith.constant 0 : i32
    return %arg0, %c0_i32, %arg1 : i32, i32, i32
  }
}

module attributes {stable_mosaic.version = 11 : i64} {
  func.func @_conv3x3s2_gemm_kernel(%arg0: i32, %arg1: i32, %arg2: memref<1x72x128xbf16, #tpu.memory_space<vmem>>, %arg3: memref<16x72xbf16, #tpu.memory_space<vmem>>, %arg4: memref<16x1xf32, #tpu.memory_space<vmem>>, %arg5: memref<1x16x128xf32, #tpu.memory_space<vmem>>) attributes {dimension_semantics = [#tpu.dimension_semantics<parallel>, #tpu.dimension_semantics<parallel>], iteration_bounds = array<i64: 2, 2>, scalar_prefetch = 0 : i64, scratch_operands = 0 : i64, tpu.core_type = #tpu.core_type<tc>, window_params = [{transform_indices = @transform_0, window_bounds = array<i64: 1, 72, 128>}, {pipeline_mode = #tpu.pipeline_mode<synchronous>, transform_indices = @transform_1, window_bounds = array<i64: 16, 72>}, {pipeline_mode = #tpu.pipeline_mode<synchronous>, transform_indices = @transform_2, window_bounds = array<i64: 16, 1>}, {transform_indices = @transform_3, window_bounds = array<i64: 1, 16, 128>}]} {
    %c0 = arith.constant 0 : index
    %c0_0 = arith.constant 0 : index
    %0 = vector.load %arg3[%c0, %c0_0] : memref<16x72xbf16, #tpu.memory_space<vmem>>, vector<16x72xbf16>
    %c0_1 = arith.constant 0 : index
    %c0_2 = arith.constant 0 : index
    %c0_3 = arith.constant 0 : index
    %1 = vector.load %arg2[%c0_1, %c0_2, %c0_3] : memref<1x72x128xbf16, #tpu.memory_space<vmem>>, vector<1x72x128xbf16>
    %2 = vector.shape_cast %1 : vector<1x72x128xbf16> to vector<72x128xbf16>
    %cst = arith.constant dense<0.000000e+00> : vector<16x128xf32>
    %3 = tpu.matmul %0, %2, %cst {dimension_numbers = #tpu.dot_dimension_numbers<[1], [0], [0], [1], [0, 0, 1, 1], [], []>} : vector<16x72xbf16>, vector<72x128xbf16>, vector<16x128xf32> -> vector<16x128xf32>
    %c0_4 = arith.constant 0 : index
    %c0_5 = arith.constant 0 : index
    %4 = vector.load %arg4[%c0_4, %c0_5] : memref<16x1xf32, #tpu.memory_space<vmem>>, vector<16x1xf32>
    %5 = vector.broadcast %4 : vector<16x1xf32> to vector<16x128xf32>
    %6 = arith.addf %3, %5 : vector<16x128xf32>
    %cst_6 = arith.constant 0.000000e+00 : f32
    %7 = vector.broadcast %cst_6 : f32 to vector<16x128xf32>
    %8 = arith.maximumf %6, %7 : vector<16x128xf32>
    %c0_7 = arith.constant 0 : index
    %c0_8 = arith.constant 0 : index
    %c0_9 = arith.constant 0 : index
    %9 = vector.load %arg5[%c0_7, %c0_8, %c0_9] : memref<1x16x128xf32, #tpu.memory_space<vmem>>, vector<1x16x128xf32>
    %10 = vector.shape_cast %9 : vector<1x16x128xf32> to vector<16x128xf32>
    %11 = vector.shape_cast %8 : vector<16x128xf32> to vector<1x16x128xf32>
    tpu.vector_store %arg5[%c0_7, %c0_8, %c0_9], %11 {strides = array<i32>} : memref<1x16x128xf32, #tpu.memory_space<vmem>>, vector<1x16x128xf32>,
    return
  }
  func.func @transform_0(%arg0: i32, %arg1: i32) -> (i32, i32, i32) {
    %c0_i32 = arith.constant 0 : i32
    %c0_i32_0 = arith.constant 0 : i32
    return %arg0, %c0_i32, %arg1 : i32, i32, i32
  }
  func.func @transform_1(%arg0: i32, %arg1: i32) -> (i32, i32) {
    %c0_i32 = arith.constant 0 : i32
    %c0_i32_0 = arith.constant 0 : i32
    %c0_i32_1 = arith.constant 0 : i32
    return %c0_i32, %c0_i32_0 : i32, i32
  }
  func.func @transform_2(%arg0: i32, %arg1: i32) -> (i32, i32) {
    %c0_i32 = arith.constant 0 : i32
    %c0_i32_0 = arith.constant 0 : i32
    %c0_i32_1 = arith.constant 0 : i32
    return %c0_i32, %c0_i32_0 : i32, i32
  }
  func.func @transform_3(%arg0: i32, %arg1: i32) -> (i32, i32, i32) {
    %c0_i32 = arith.constant 0 : i32
    %c0_i32_0 = arith.constant 0 : i32
    return %arg0, %c0_i32, %arg1 : i32, i32, i32
  }
}

</mosaic_0001>

<llo_original>
// kernel: a_call__.2
$region0: #{a_call__.2}
  #allocation0 [shape = 'u32[]', space=smem, size = 0x4, offset = 0x4, fixed_abs, tag = 'smem constant byte address 0x4 - core index']
  #allocation1 [shape = 'u32[72,128]{1,0:T(1,128)}', space=vmem, size = 0x9000, scoped, tag = 'internal scratch']
  %s0 = inlined_call_operand.vmem [shape: bf16[2,27,1024], index: 0, kind: input, shape index: {}]
  %s1 = inlined_call_operand.vmem [shape: bf16[8,27], index: 1, kind: input, shape index: {}]
  %s2 = inlined_call_operand.vmem [shape: f32[8,1], index: 2, kind: input, shape index: {}]
  %s3 = inlined_call_operand.vmem [shape: f32[2,8,1024], index: 3, kind: output, shape index: {}]
  %s4 = sld [smem:[#allocation0]]
  $region68: #{a_call__.2} parent=0
    _
  %s6 = ssub.s32 1, %s4
  %s7 = scalar_select 0, %s6, %s4
  $region1: #{a_call__.2} parent=0
    #allocation2 [shape = 'u8[65536]{0}', space=vmem, size = 0x10000, scoped, tag = 'input window, operand 0']
    loop: start=0, step=1, limit=6
    $region2: #{a_call__.2} parent=1 // loop_pre_header
      _
    $region3: #{a_call__.2} parent=1 // loop_header
      %s9 = sphi 0, %s13
      %p10 = scmp.ge.s32.totalorder %s9, 6
      %s16 = sphi 0, %s28
      %s17 = sphi 0, %s24
      %s18 = sphi 0, %s16
      %s19 = sphi 0, %s17
      %s20 = sphi 0, %s18
      %s21 = sphi 0, %s19
      %s33 = sphi 0, %s35
      %s36 = sphi 0, %s33
      %s37 = sphi 0, %s36
      %s53 = sphi 0, %s37
      %s57 = sphi 0, %s57
      %s59 = sphi 0, %s57
      %s60 = sphi 0, %s59
      %s74 = sphi 0, %s60
      %s78 = sphi 0, %s78
      %s80 = sphi 0, %s78
      %s81 = sphi 0, %s80
      %s95 = sphi 0, %s81
      %s103 = sphi 0, %s105
      %s106 = sphi 0, %s103
      %s107 = sphi 0, %s106
      %s123 = sphi 0, %s107
    $region4: #{a_call__.2} parent=1 // loop_header_branch
      %12 = sbr.rel (%p10) target = $region8
    $region5: #{a_call__.2} parent=1 // loop_body
      %s14 = ssub.s32 %s9, 1
      %s15 = ssub.s32 %s9, 2
      %s22 = sadd.s32 1, %s17
      %p23 = scmp.ge.s32.totalorder %s22, 2
      %s24 = scalar_select %p23, 0, %s22
      %s25 = sadd.s32 1, %s16
      %s26 = scalar_select %p23, %s25, %s16
      %p27 = scmp.ge.s32.totalorder %s26, 2
      %s28 = scalar_select %p27, 0, %s26
      %s29 = ssub.s32 %s16, %s28
      %s30 = ssub.s32 %s17, %s24
      %s31 = sor.u32 %s29, %s30
      %p32 = scmp.eq.s32.totalorder %s31, 0
      %s34 = sadd.s32 %s33, 1
      %s35 = scalar_select %p32, %s33, %s34
      %p38 = pneg %p32
      %p39 = scmp.eq.s32.totalorder %s9, 3
      %p40 = por %p38, %p39
      %p41 = scmp.ne.s32.totalorder %s33, %s36
      %p42 = scmp.eq.s32.totalorder %s9, 0
      %p43 = por %p41, %p42
      %p44 = scmp.ne.s32.totalorder %s33, %s36
      %p45 = scmp.eq.s32.totalorder %s14, 3
      %p46 = por %p44, %p45
      %p47 = scmp.ne.s32.totalorder %s36, %s37
      %p48 = scmp.eq.s32.totalorder %s14, 0
      %p49 = por %p47, %p48
      %p50 = scmp.ne.s32.totalorder %s36, %s37
      %p51 = scmp.eq.s32.totalorder %s15, 3
      %p52 = por %p50, %p51
      %p54 = scmp.ne.s32.totalorder %s37, %s53
      %p55 = scmp.eq.s32.totalorder %s15, 0
      %p56 = por %p54, %p55
      %s58 = sadd.s32 %s57, 1
      %p61 = scmp.eq.s32.totalorder %s9, 3
      %p62 = scmp.ne.s32.totalorder %s57, %s59
      %p63 = scmp.eq.s32.totalorder %s9, 0
      %p64 = por %p62, %p63
      %p65 = scmp.ne.s32.totalorder %s57, %s59
      %p66 = scmp.eq.s32.totalorder %s14, 3
      %p67 = por %p65, %p66
      %p68 = scmp.ne.s32.totalorder %s59, %s60
      %p69 = scmp.eq.s32.totalorder %s14, 0
      %p70 = por %p68, %p69
      %p71 = scmp.ne.s32.totalorder %s59, %s60
      %p72 = scmp.eq.s32.totalorder %s15, 3
      %p73 = por %p71, %p72
      %p75 = scmp.ne.s32.totalorder %s60, %s74
      %p76 = scmp.eq.s32.totalorder %s15, 0
      %p77 = por %p75, %p76
      %s79 = sadd.s32 %s78, 1
      %p82 = scmp.eq.s32.totalorder %s9, 3
      %p83 = scmp.ne.s32.totalorder %s78, %s80
      %p84 = scmp.eq.s32.totalorder %s9, 0
      %p85 = por %p83, %p84
      %p86 = scmp.ne.s32.totalorder %s78, %s80
      %p87 = scmp.eq.s32.totalorder %s14, 3
      %p88 = por %p86, %p87
      %p89 = scmp.ne.s32.totalorder %s80, %s81
      %p90 = scmp.eq.s32.totalorder %s14, 0
      %p91 = por %p89, %p90
      %p92 = scmp.ne.s32.totalorder %s80, %s81
      %p93 = scmp.eq.s32.totalorder %s15, 3
      %p94 = por %p92, %p93
      %p96 = scmp.ne.s32.totalorder %s81, %s95
      %p97 = scmp.eq.s32.totalorder %s15, 0
      %p98 = por %p96, %p97
      %s99 = ssub.s32 %s16, %s28
      %s100 = ssub.s32 %s17, %s24
      %s101 = sor.u32 %s99, %s100
      %p102 = scmp.eq.s32.totalorder %s101, 0
      %s104 = sadd.s32 %s103, 1
      %s105 = scalar_select %p102, %s103, %s104
      %p108 = pneg %p102
      %p109 = scmp.eq.s32.totalorder %s9, 3
      %p110 = por %p108, %p109
      %p111 = scmp.ne.s32.totalorder %s103, %s106
      %p112 = scmp.eq.s32.totalorder %s9, 0
      %p113 = por %p111, %p112
      %p114 = scmp.ne.s32.totalorder %s103, %s106
      %p115 = scmp.eq.s32.totalorder %s14, 3
      %p116 = por %p114, %p115
      %p117 = scmp.ne.s32.totalorder %s106, %s107
      %p118 = scmp.eq.s32.totalorder %s14, 0
      %p119 = por %p117, %p118
      %p120 = scmp.ne.s32.totalorder %s106, %s107
      %p121 = scmp.eq.s32.totalorder %s15, 3
      %p122 = por %p120, %p121
      %p124 = scmp.ne.s32.totalorder %s107, %s123
      %p125 = scmp.eq.s32.totalorder %s15, 0
      %p126 = por %p124, %p125
      %p127 = scmp.le.s32.totalorder 1, %s9
      %p128 = scmp.lt.s32.totalorder %s9, 5
      %p129 = pnand %p127, %p128
      %p130 = pneg %p129
      // Predicated region
      $region9: #{a_call__.2} parent=5 // pred_check
        _
      $region10: #{a_call__.2} parent=5 // pred_check_branch
        %132 = sbr.rel (%p129) target = $region12
      $region11: #{a_call__.2} parent=5 // pred_region
        %s133 = ssub.s32 %s9, 1
        // Predicated region
        $region13: #{a_call__.2} parent=11 // pred_check
          %p134 = pneg %p70
        $region14: #{a_call__.2} parent=11 // pred_check_branch
          %136 = sbr.rel (%p134) target = $region16
        $region15: #{a_call__.2} parent=11 // pred_region
          _
        $region16: #{a_call__.2} parent=11 // pred_fallthru
          _
        // Predicated region
        $region17: #{a_call__.2} parent=11 // pred_check
          %p137 = pneg %p91
        $region18: #{a_call__.2} parent=11 // pred_check_branch
          %139 = sbr.rel (%p137) target = $region20
        $region19: #{a_call__.2} parent=11 // pred_region
          _
        $region20: #{a_call__.2} parent=11 // pred_fallthru
          _
      $region12: #{a_call__.2} parent=5 // pred_fallthru
        _
      %p140 = scmp.lt.s32.totalorder %s9, 4
      // Predicated region
      $region21: #{a_call__.2} parent=5 // pred_check
        %p141 = pneg %p140
      $region22: #{a_call__.2} parent=5 // pred_check_branch
        %143 = sbr.rel (%p141) target = $region24
      $region23: #{a_call__.2} parent=5 // pred_region
        // Predicated region
        $region25: #{a_call__.2} parent=23 // pred_check
          %p144 = pneg %p43
        $region26: #{a_call__.2} parent=23 // pred_check_branch
          %146 = sbr.rel (%p144) target = $region28
        $region27: #{a_call__.2} parent=23 // pred_region
          %s147 = sand.u32 %s33, 1
          %s148 = sand.u32 %s33, 1
          %s149 = smul.addr %s148, 64
          %s150 = scalar_lea.vmem [#allocation2], %s149
          %s151 = smul.u32 4, %s17
          %s152 = smul.addr %s16, 32
          %s153 = sadd.s32 %s151, %s152
          %s154 = smul.addr %s153, 4
          %s155 = scalar_lea.vmem %s0, %s154
          // Predicated region
          $region29: #{a_call__.2} parent=27 // pred_check
            _
          $region30: #{a_call__.2} parent=27 // pred_check_branch
            %157 = sbr.rel (0) target = $region32
          $region31: #{a_call__.2} parent=27 // pred_region
            // Predicated region
            $region33: #{a_call__.2} parent=31 // pred_check
              _
            $region34: #{a_call__.2} parent=31 // pred_check_branch
              %159 = sbr.rel (0) target = $region36
            $region35: #{a_call__.2} parent=31 // pred_region
              loop: start=0, step=1, limit=1
              $region37: #{a_call__.2} parent=35 // loop_pre_header
                _
              $region38: #{a_call__.2} parent=35 // loop_header
                %s161 = sphi 0, %s165
                %p162 = scmp.ge.s32.totalorder %s161, 1
                %s166 = sphi %s155, %s155
                %s167 = sphi %s150, %s150
              $region39: #{a_call__.2} parent=35 // loop_header_branch
                %164 = sbr.rel (%p162) target = $region43
              $region40: #{a_call__.2} parent=35 // loop_body
                %v168 = vld [vmem:[%s166] sm:$0xff]
                %169 = vst [vmem:[%s167] sm:$0xff] %v168
                %v170 = vld [vmem:[%s166 + $0x8] sm:$0xff]
                %171 = vst [vmem:[%s167 + $0x8] sm:$0xff] %v170
                %v172 = vld [vmem:[%s166 + $0x20] sm:$0xff]
                %173 = vst [vmem:[%s167 + $0x10] sm:$0xff] %v172
                %v174 = vld [vmem:[%s166 + $0x28] sm:$0xff]
                %175 = vst [vmem:[%s167 + $0x18] sm:$0xff] %v174
                %v176 = vld [vmem:[%s166 + $0x40] sm:$0xff]
                %177 = vst [vmem:[%s167 + $0x20] sm:$0xff] %v176
                %v178 = vld [vmem:[%s166 + $0x48] sm:$0xff]
                %179 = vst [vmem:[%s167 + $0x28] sm:$0xff] %v178
                %v180 = vld [vmem:[%s166 + $0x60] sm:$0xff]
                %181 = vst [vmem:[%s167 + $0x30] sm:$0xff] %v180
                %v182 = vld [vmem:[%s166 + $0x68] sm:$0xff]
                %183 = vst [vmem:[%s167 + $0x38] sm:$0xff] %v182
              $region41: #{a_call__.2} parent=35 // loop_footer
                %s165 = sadd.s32 1, %s161
              $region42: #{a_call__.2} parent=35 // loop_footer_branch
                %160 = sbr.rel target = $region38
              $region43: #{a_call__.2} parent=35 // loop_exit
                _
            $region36: #{a_call__.2} parent=31 // pred_fallthru
              _
            // Predicated region
            $region44: #{a_call__.2} parent=31 // pred_check
              _
            $region45: #{a_call__.2} parent=31 // pred_check_branch
              %185 = sbr.rel target = $region47
            $region46: #{a_call__.2} parent=31 // pred_region
              _
            $region47: #{a_call__.2} parent=31 // pred_fallthru
              _
          $region32: #{a_call__.2} parent=27 // pred_fallthru
            _
          %186 = vnop
        $region28: #{a_call__.2} parent=23 // pred_fallthru
          _
      $region24: #{a_call__.2} parent=5 // pred_fallthru
        _
      %p187 = scmp.le.s32.totalorder 1, %s9
      %p188 = scmp.lt.s32.totalorder %s9, 5
      %p189 = pnand %p187, %p188
      %p190 = pneg %p189
      // Predicated region
      $region48: #{a_call__.2} parent=5 // pred_check
        _
      $region49: #{a_call__.2} parent=5 // pred_check_branch
        %192 = sbr.rel (%p189) target = $region51
      $region50: #{a_call__.2} parent=5 // pred_region
        %s193 = ssub.s32 %s9, 1
        %s194 = sand.u32 %s36, 1
        %s195 = sand.u32 %s36, 1
        %s196 = smul.addr %s195, 64
        %s197 = scalar_lea.vmem [#allocation2], %s196
        // Predicated region
        $region52: #{a_call__.2} parent=50 // pred_check
          %p198 = pneg %p49
        $region53: #{a_call__.2} parent=50 // pred_check_branch
          %200 = sbr.rel (%p198) target = $region55
        $region54: #{a_call__.2} parent=50 // pred_region
          _
        $region55: #{a_call__.2} parent=50 // pred_fallthru
          _
        %s201 = sand.u32 %s36, 1
        %s202 = sand.u32 %s36, 1
        %s203 = smul.addr %s202, 64
        %s204 = scalar_lea.vmem [#allocation2], %s203
        %p205 = pneg %p49
        %p206 = pneg %p46
        %p207 = pneg %p70
        %p208 = pneg %p67
        %p209 = pneg %p91
        %p210 = pneg %p88
        %p211 = pneg %p119
        %p212 = pneg %p116
        %s213 = smul.u32 4, %s19
        %p214 = scmp.lt.s32.totalorder %s18, 1
        %s215 = scalar_select %p214, %s18, 1
        %p216 = scmp.lt.s32.totalorder %s213, 7
        %s217 = scalar_select %p216, %s213, 7
        %s218 = smul.addr %s215, 8
        %s219 = sadd.s32 %s217, %s218
        %s220 = smul.addr %s219, 8
        %s221 = scalar_lea.vmem %s3, %s220
        %s222 = smul.u32 4, %s19
        %s223 = smul.u32 4, %s19
        %p224 = scmp.lt.s32.totalorder %s18, 1
        %s225 = scalar_select %p224, %s18, 1
        %p226 = scmp.lt.s32.totalorder %s223, 7
        %s227 = scalar_select %p226, %s223, 7
        %s228 = smul.addr %s225, 8
        %s229 = sadd.s32 %s227, %s228
        %s230 = smul.addr %s229, 8
        %s231 = scalar_lea.vmem %s3, %s230
        %s232 = smul.u32 4, %s19
        %v234 = vld [vmem:[%s1] sm:$0xf]
        %v235 = vld [vmem:[%s197] sm:$0xff]
        %v236 = vld [vmem:[%s197 + $0x8] sm:$0xff]
        %v237 = vld [vmem:[%s197 + $0x10] sm:$0xff]
        %v238 = vld [vmem:[%s197 + $0x18] sm:$0xff]
        %v239 = vld [vmem:[%s197 + $0x20] sm:$0xff]
        %v240 = vld [vmem:[%s197 + $0x28] sm:$0xff]
        %v241 = vld [vmem:[%s197 + $0x30] sm:$0x33]
        %v242 = vld [vmem:[%s197 + $0x38] sm:$0x33]
        %v243 = vld [vmem:[%s2] sm:$0xff]
        %245 = vset.pattern.permute.xlu0 0
        %246 = vperm.xlu0 %245, %v243
        %v247 = vpop.permute.xlu0 %246
        %v257 = vunpack.c.l.b16 %v235
        %v258 = vunpack.c.h.b16 %v235
        %v259 = vunpack.c.l.b16 %v236
        %v260 = vunpack.c.h.b16 %v236
        %v261 = vunpack.c.l.b16 %v237
        %v262 = vunpack.c.h.b16 %v237
        %v263 = vunpack.c.l.b16 %v238
        %v264 = vunpack.c.h.b16 %v238
        %v265 = vunpack.c.l.b16 %v239
        %v266 = vunpack.c.h.b16 %v239
        %v267 = vunpack.c.l.b16 %v240
        %v268 = vunpack.c.h.b16 %v240
        %v269 = vunpack.c.l.b16 %v241
        %v270 = vunpack.c.h.b16 %v241
        %v271 = vunpack.c.l.b16 %v242
        %v272 = vunpack.c.h.b16 %v242
        %v273 = vpack.c.b16 %v261, %v257
        %v274 = vpack.c.b16 %v262, %v258
        %v275 = vpack.c.b16 %v263, %v259
        %v276 = vpack.c.b16 %v264, %v260
        %v277 = vpack.c.b16 %v269, %v265
        %v278 = vpack.c.b16 %v270, %v266
        %v279 = vpack.c.b16 %v271, %v267
        %v280 = vpack.c.b16 %v272, %v268
        %vm285 = vcmask 220160
        %v287 = vsel %vm285, %v234, 0
        %vm289 = vcmask 1044480
        %vm290 = vcmask 1045504
        %v291 = vsel %vm289, 4294967295, 65535
        %v292 = vsel %vm290, %v291, 0
        %v294 = vand.u32 %v277, %v292
        %v297 = vand.u32 %v278, %v292
        %v300 = vand.u32 %v279, %v292
        %v303 = vand.u32 %v280, %v292
        %305 = vmatpush.bf16.msra.mxu0 0
        %306 = vmatpush.bf16.msra.mxu0 0
        %307 = vmatpush.bf16.msra.mxu0 0
        %308 = vmatpush.bf16.msra.mxu0 0
        %309 = vmatpush.bf16.msra.mxu0 0
        %310 = vmatpush.bf16.msra.mxu0 0
        %311 = vmatpush.bf16.msra.mxu0 %v294
        %312 = vmatpush.bf16.msra.mxu0 %v273
        %313 = vmatmul.bf16.gmra.mxu0 %v287
        %v314 = vpop.f32.mrf.mxu0
        %v315 = vadd.f32 %v247, %v314
        %v316 = vpop.f32.mrf.mxu0
        %317 = vdwg.mxu0
        %318 = vmatpush.bf16.msra.mxu0 0
        %319 = vmatpush.bf16.msra.mxu0 0
        %320 = vmatpush.bf16.msra.mxu0 0
        %321 = vmatpush.bf16.msra.mxu0 0
        %322 = vmatpush.bf16.msra.mxu0 0
        %323 = vmatpush.bf16.msra.mxu0 0
        %324 = vmatpush.bf16.msra.mxu0 %v297
        %325 = vmatpush.bf16.msra.mxu0 %v274
        %326 = vmatmul.bf16.gmra.mxu0 %v287
        %v327 = vpop.f32.mrf.mxu0
        %v328 = vadd.f32 %v247, %v327
        %v329 = vpop.f32.mrf.mxu0
        %330 = vdwg.mxu0
        %331 = vmatpush.bf16.msra.mxu0 0
        %332 = vmatpush.bf16.msra.mxu0 0
        %333 = vmatpush.bf16.msra.mxu0 0
        %334 = vmatpush.bf16.msra.mxu0 0
        %335 = vmatpush.bf16.msra.mxu0 0
        %336 = vmatpush.bf16.msra.mxu0 0
        %337 = vmatpush.bf16.msra.mxu0 %v300
        %338 = vmatpush.bf16.msra.mxu0 %v275
        %339 = vmatmul.bf16.gmra.mxu0 %v287
        %v340 = vpop.f32.mrf.mxu0
        %v341 = vadd.f32 %v247, %v340
        %v342 = vpop.f32.mrf.mxu0
        %343 = vdwg.mxu0
        %344 = vmatpush.bf16.msra.mxu0 0
        %345 = vmatpush.bf16.msra.mxu0 0
        %346 = vmatpush.bf16.msra.mxu0 0
        %347 = vmatpush.bf16.msra.mxu0 0
        %348 = vmatpush.bf16.msra.mxu0 0
        %349 = vmatpush.bf16.msra.mxu0 0
        %350 = vmatpush.bf16.msra.mxu0 %v303
        %351 = vmatpush.bf16.msra.mxu0 %v276
        %352 = vmatmul.bf16.gmra.mxu0 %v287
        %v353 = vpop.f32.mrf.mxu0
        %v354 = vadd.f32 %v247, %v353
        %v355 = vpop.f32.mrf.mxu0
        %356 = vdwg.mxu0
        %v357 = vmax.f32 %v315, 0.0
        %v358 = vmax.f32 %v328, 0.0
        %v359 = vmax.f32 %v341, 0.0
        %v360 = vmax.f32 %v354, 0.0
        %361 = vst [vmem:[%s231] sm:$0xff] %v357
        %362 = vst [vmem:[%s231 + $0x8] sm:$0xff] %v358
        %363 = vst [vmem:[%s231 + $0x10] sm:$0xff] %v359
        %364 = vst [vmem:[%s231 + $0x18] sm:$0xff] %v360
        %s365 = smul.u32 4, %s19
        %p366 = scmp.lt.s32.totalorder %s18, 1
        %s367 = scalar_select %p366, %s18, 1
        %p368 = scmp.lt.s32.totalorder %s365, 7
        %s369 = scalar_select %p368, %s365, 7
        %s370 = smul.addr %s367, 8
        %s371 = sadd.s32 %s369, %s370
        %s372 = smul.addr %s371, 8
        %s373 = scalar_lea.vmem %s3, %s372
        // Predicated region
        $region56: #{a_call__.2} parent=50 // pred_check
          %p374 = pneg %p116
        $region57: #{a_call__.2} parent=50 // pred_check_branch
          %376 = sbr.rel (%p374) target = $region59
        $region58: #{a_call__.2} parent=50 // pred_region
          %s377 = smul.u32 4, %s19
        $region59: #{a_call__.2} parent=50 // pred_fallthru
          _
      $region51: #{a_call__.2} parent=5 // pred_fallthru
        _
      %p378 = scmp.le.s32.totalorder 2, %s9
      // Predicated region
      $region60: #{a_call__.2} parent=5 // pred_check
        %p379 = pneg %p378
      $region61: #{a_call__.2} parent=5 // pred_check_branch
        %381 = sbr.rel (%p379) target = $region63
      $region62: #{a_call__.2} parent=5 // pred_region
        %s382 = ssub.s32 %s9, 2
        // Predicated region
        $region64: #{a_call__.2} parent=62 // pred_check
          %p383 = pneg %p122
        $region65: #{a_call__.2} parent=62 // pred_check_branch
          %385 = sbr.rel (%p383) target = $region67
        $region66: #{a_call__.2} parent=62 // pred_region
          %s386 = smul.u32 4, %s21
          %p387 = scmp.lt.s32.totalorder %s20, 1
          %s388 = scalar_select %p387, %s20, 1
          %p389 = scmp.lt.s32.totalorder %s386, 7
          %s390 = scalar_select %p389, %s386, 7
          %s391 = smul.addr %s388, 8
          %s392 = sadd.s32 %s390, %s391
          %s393 = smul.addr %s392, 8
          %s394 = scalar_lea.vmem %s3, %s393
        $region67: #{a_call__.2} parent=62 // pred_fallthru
          _
      $region63: #{a_call__.2} parent=5 // pred_fallthru
        _
    $region6: #{a_call__.2} parent=1 // loop_footer
      %s13 = sadd.s32 1, %s9
    $region7: #{a_call__.2} parent=1 // loop_footer_branch
      %8 = sbr.rel target = $region3
    $region8: #{a_call__.2} parent=1 // loop_exit
      _

// kernel: a_call__.3
$region0: #{a_call__.3}
  #allocation0 [shape = 'u32[]', space=smem, size = 0x4, offset = 0x4, fixed_abs, tag = 'smem constant byte address 0x4 - core index']
  #allocation1 [shape = 'u32[72,128]{1,0:T(1,128)}', space=vmem, size = 0x9000, scoped, tag = 'internal scratch']
  %s0 = inlined_call_operand.vmem [shape: bf16[2,72,256], index: 0, kind: input, shape index: {}]
  %s1 = inlined_call_operand.vmem [shape: bf16[16,72], index: 1, kind: input, shape index: {}]
  %s2 = inlined_call_operand.vmem [shape: f32[16,1], index: 2, kind: input, shape index: {}]
  %s3 = inlined_call_operand.vmem [shape: f32[2,16,256], index: 3, kind: output, shape index: {}]
  %s4 = sld [smem:[#allocation0]]
  $region120: #{a_call__.3} parent=0
    _
  %s6 = ssub.s32 1, %s4
  %s7 = scalar_select 0, %s6, %s4
  $region1: #{a_call__.3} parent=0
    #allocation2 [shape = 'u8[36864]{0}', space=vmem, size = 0x9000, scoped, tag = 'input window, operand 0']
    #allocation3 [shape = 'u8[16384]{0}', space=vmem, size = 0x4000, scoped, tag = 'output window, operand 0']
    loop: start=0, step=1, limit=6
    $region2: #{a_call__.3} parent=1 // loop_pre_header
      _
    $region3: #{a_call__.3} parent=1 // loop_header
      %s9 = sphi 0, %s13
      %p10 = scmp.ge.s32.totalorder %s9, 6
      %s16 = sphi 0, %s28
      %s17 = sphi 0, %s24
      %s18 = sphi 0, %s16
      %s19 = sphi 0, %s17
      %s20 = sphi 0, %s18
      %s21 = sphi 0, %s19
      %s33 = sphi 0, %s35
      %s36 = sphi 0, %s33
      %s37 = sphi 0, %s36
      %s53 = sphi 0, %s37
      %s57 = sphi 0, %s57
      %s59 = sphi 0, %s57
      %s60 = sphi 0, %s59
      %s74 = sphi 0, %s60
      %s78 = sphi 0, %s78
      %s80 = sphi 0, %s78
      %s81 = sphi 0, %s80
      %s95 = sphi 0, %s81
      %s103 = sphi 0, %s105
      %s106 = sphi 0, %s103
      %s107 = sphi 0, %s106
      %s123 = sphi 0, %s107
    $region4: #{a_call__.3} parent=1 // loop_header_branch
      %12 = sbr.rel (%p10) target = $region8
    $region5: #{a_call__.3} parent=1 // loop_body
      %s14 = ssub.s32 %s9, 1
      %s15 = ssub.s32 %s9, 2
      %s22 = sadd.s32 1, %s17
      %p23 = scmp.ge.s32.totalorder %s22, 2
      %s24 = scalar_select %p23, 0, %s22
      %s25 = sadd.s32 1, %s16
      %s26 = scalar_select %p23, %s25, %s16
      %p27 = scmp.ge.s32.totalorder %s26, 2
      %s28 = scalar_select %p27, 0, %s26
      %s29 = ssub.s32 %s16, %s28
      %s30 = ssub.s32 %s17, %s24
      %s31 = sor.u32 %s29, %s30
      %p32 = scmp.eq.s32.totalorder %s31, 0
      %s34 = sadd.s32 %s33, 1
      %s35 = scalar_select %p32, %s33, %s34
      %p38 = pneg %p32
      %p39 = scmp.eq.s32.totalorder %s9, 3
      %p40 = por %p38, %p39
      %p41 = scmp.ne.s32.totalorder %s33, %s36
      %p42 = scmp.eq.s32.totalorder %s9, 0
      %p43 = por %p41, %p42
      %p44 = scmp.ne.s32.totalorder %s33, %s36
      %p45 = scmp.eq.s32.totalorder %s14, 3
      %p46 = por %p44, %p45
      %p47 = scmp.ne.s32.totalorder %s36, %s37
      %p48 = scmp.eq.s32.totalorder %s14, 0
      %p49 = por %p47, %p48
      %p50 = scmp.ne.s32.totalorder %s36, %s37
      %p51 = scmp.eq.s32.totalorder %s15, 3
      %p52 = por %p50, %p51
      %p54 = scmp.ne.s32.totalorder %s37, %s53
      %p55 = scmp.eq.s32.totalorder %s15, 0
      %p56 = por %p54, %p55
      %s58 = sadd.s32 %s57, 1
      %p61 = scmp.eq.s32.totalorder %s9, 3
      %p62 = scmp.ne.s32.totalorder %s57, %s59
      %p63 = scmp.eq.s32.totalorder %s9, 0
      %p64 = por %p62, %p63
      %p65 = scmp.ne.s32.totalorder %s57, %s59
      %p66 = scmp.eq.s32.totalorder %s14, 3
      %p67 = por %p65, %p66
      %p68 = scmp.ne.s32.totalorder %s59, %s60
      %p69 = scmp.eq.s32.totalorder %s14, 0
      %p70 = por %p68, %p69
      %p71 = scmp.ne.s32.totalorder %s59, %s60
      %p72 = scmp.eq.s32.totalorder %s15, 3
      %p73 = por %p71, %p72
      %p75 = scmp.ne.s32.totalorder %s60, %s74
      %p76 = scmp.eq.s32.totalorder %s15, 0
      %p77 = por %p75, %p76
      %s79 = sadd.s32 %s78, 1
      %p82 = scmp.eq.s32.totalorder %s9, 3
      %p83 = scmp.ne.s32.totalorder %s78, %s80
      %p84 = scmp.eq.s32.totalorder %s9, 0
      %p85 = por %p83, %p84
      %p86 = scmp.ne.s32.totalorder %s78, %s80
      %p87 = scmp.eq.s32.totalorder %s14, 3
      %p88 = por %p86, %p87
      %p89 = scmp.ne.s32.totalorder %s80, %s81
      %p90 = scmp.eq.s32.totalorder %s14, 0
      %p91 = por %p89, %p90
      %p92 = scmp.ne.s32.totalorder %s80, %s81
      %p93 = scmp.eq.s32.totalorder %s15, 3
      %p94 = por %p92, %p93
      %p96 = scmp.ne.s32.totalorder %s81, %s95
      %p97 = scmp.eq.s32.totalorder %s15, 0
      %p98 = por %p96, %p97
      %s99 = ssub.s32 %s16, %s28
      %s100 = ssub.s32 %s17, %s24
      %s101 = sor.u32 %s99, %s100
      %p102 = scmp.eq.s32.totalorder %s101, 0
      %s104 = sadd.s32 %s103, 1
      %s105 = scalar_select %p102, %s103, %s104
      %p108 = pneg %p102
      %p109 = scmp.eq.s32.totalorder %s9, 3
      %p110 = por %p108, %p109
      %p111 = scmp.ne.s32.totalorder %s103, %s106
      %p112 = scmp.eq.s32.totalorder %s9, 0
      %p113 = por %p111, %p112
      %p114 = scmp.ne.s32.totalorder %s103, %s106
      %p115 = scmp.eq.s32.totalorder %s14, 3
      %p116 = por %p114, %p115
      %p117 = scmp.ne.s32.totalorder %s106, %s107
      %p118 = scmp.eq.s32.totalorder %s14, 0
      %p119 = por %p117, %p118
      %p120 = scmp.ne.s32.totalorder %s106, %s107
      %p121 = scmp.eq.s32.totalorder %s15, 3
      %p122 = por %p120, %p121
      %p124 = scmp.ne.s32.totalorder %s107, %s123
      %p125 = scmp.eq.s32.totalorder %s15, 0
      %p126 = por %p124, %p125
      %p127 = scmp.le.s32.totalorder 1, %s9
      %p128 = scmp.lt.s32.totalorder %s9, 5
      %p129 = pnand %p127, %p128
      %p130 = pneg %p129
      // Predicated region
      $region9: #{a_call__.3} parent=5 // pred_check
        _
      $region10: #{a_call__.3} parent=5 // pred_check_branch
        %132 = sbr.rel (%p129) target = $region12
      $region11: #{a_call__.3} parent=5 // pred_region
        %s133 = ssub.s32 %s9, 1
        // Predicated region
        $region13: #{a_call__.3} parent=11 // pred_check
          %p134 = pneg %p70
        $region14: #{a_call__.3} parent=11 // pred_check_branch
          %136 = sbr.rel (%p134) target = $region16
        $region15: #{a_call__.3} parent=11 // pred_region
          _
        $region16: #{a_call__.3} parent=11 // pred_fallthru
          _
        // Predicated region
        $region17: #{a_call__.3} parent=11 // pred_check
          %p137 = pneg %p91
        $region18: #{a_call__.3} parent=11 // pred_check_branch
          %139 = sbr.rel (%p137) target = $region20
        $region19: #{a_call__.3} parent=11 // pred_region
          _
        $region20: #{a_call__.3} parent=11 // pred_fallthru
          _
      $region12: #{a_call__.3} parent=5 // pred_fallthru
        _
      %p140 = scmp.lt.s32.totalorder %s9, 4
      // Predicated region
      $region21: #{a_call__.3} parent=5 // pred_check
        %p141 = pneg %p140
      $region22: #{a_call__.3} parent=5 // pred_check_branch
        %143 = sbr.rel (%p141) target = $region24
      $region23: #{a_call__.3} parent=5 // pred_region
        // Predicated region
        $region25: #{a_call__.3} parent=23 // pred_check
          %p144 = pneg %p43
        $region26: #{a_call__.3} parent=23 // pred_check_branch
          %146 = sbr.rel (%p144) target = $region28
        $region27: #{a_call__.3} parent=23 // pred_region
          %s147 = sand.u32 %s33, 1
          %s148 = sand.u32 %s33, 1
          %s149 = smul.addr %s148, 36
          %s150 = scalar_lea.vmem [#allocation2], %s149
          %s151 = smul.addr %s16, 18
          %s152 = sadd.s32 %s17, %s151
          %s153 = smul.addr %s152, 4
          %s154 = scalar_lea.vmem %s0, %s153
          // Predicated region
          $region29: #{a_call__.3} parent=27 // pred_check
            _
          $region30: #{a_call__.3} parent=27 // pred_check_branch
            %156 = sbr.rel (0) target = $region32
          $region31: #{a_call__.3} parent=27 // pred_region
            // Predicated region
            $region33: #{a_call__.3} parent=31 // pred_check
              _
            $region34: #{a_call__.3} parent=31 // pred_check_branch
              %158 = sbr.rel target = $region36
            $region35: #{a_call__.3} parent=31 // pred_region
              // Predicated region
              $region48: #{a_call__.3} parent=35 // pred_check
                _
              $region49: #{a_call__.3} parent=35 // pred_check_branch
                %190 = sbr.rel (0) target = $region51
              $region50: #{a_call__.3} parent=35 // pred_region
                loop: start=0, step=1, limit=1
                $region52: #{a_call__.3} parent=50 // loop_pre_header
                  _
                $region53: #{a_call__.3} parent=50 // loop_header
                  %s192 = sphi 0, %s196
                  %p193 = scmp.ge.s32.totalorder %s192, 1
                  %s197 = sphi %s154, %s154
                  %s198 = sphi %s150, %s150
                $region54: #{a_call__.3} parent=50 // loop_header_branch
                  %195 = sbr.rel (%p193) target = $region58
                $region55: #{a_call__.3} parent=50 // loop_body
                  _
                $region56: #{a_call__.3} parent=50 // loop_footer
                  %s196 = sadd.s32 1, %s192
                $region57: #{a_call__.3} parent=50 // loop_footer_branch
                  %191 = sbr.rel target = $region53
                $region58: #{a_call__.3} parent=50 // loop_exit
                  _
                %s200 = ssub.s32 16, 1
                loop: start=0, step=1, limit=1
                $region59: #{a_call__.3} parent=50 // loop_pre_header
                  _
                $region60: #{a_call__.3} parent=50 // loop_header
                  %s202 = sphi 0, %s206
                  %p203 = scmp.ge.s32.totalorder %s202, 1
                  %s207 = sphi %s154, %s154
                  %s208 = sphi %s150, %s150
                $region61: #{a_call__.3} parent=50 // loop_header_branch
                  %205 = sbr.rel (%p203) target = $region65
                $region62: #{a_call__.3} parent=50 // loop_body
                  %v209 = vld [vmem:[%s207] sm:%s200]
                  %210 = vst [vmem:[%s208] sm:%s200] %v209
                  %v211 = vld [vmem:[%s207 + $0x8] sm:%s200]
                  %212 = vst [vmem:[%s208 + $0x4] sm:%s200] %v211
                  %v213 = vld [vmem:[%s207 + $0x10] sm:%s200]
                  %214 = vst [vmem:[%s208 + $0x8] sm:%s200] %v213
                  %v215 = vld [vmem:[%s207 + $0x18] sm:%s200]
                  %216 = vst [vmem:[%s208 + $0xc] sm:%s200] %v215
                  %v217 = vld [vmem:[%s207 + $0x20] sm:%s200]
                  %218 = vst [vmem:[%s208 + $0x10] sm:%s200] %v217
                  %v219 = vld [vmem:[%s207 + $0x28] sm:%s200]
                  %220 = vst [vmem:[%s208 + $0x14] sm:%s200] %v219
                  %v221 = vld [vmem:[%s207 + $0x30] sm:%s200]
                  %222 = vst [vmem:[%s208 + $0x18] sm:%s200] %v221
                  %v223 = vld [vmem:[%s207 + $0x38] sm:%s200]
                  %224 = vst [vmem:[%s208 + $0x1c] sm:%s200] %v223
                  %v225 = vld [vmem:[%s207 + $0x40] sm:%s200]
                  %226 = vst [vmem:[%s208 + $0x20] sm:%s200] %v225
                $region63: #{a_call__.3} parent=50 // loop_footer
                  %s206 = sadd.s32 1, %s202
                $region64: #{a_call__.3} parent=50 // loop_footer_branch
                  %201 = sbr.rel target = $region60
                $region65: #{a_call__.3} parent=50 // loop_exit
                  _
              $region51: #{a_call__.3} parent=35 // pred_fallthru
                _
            $region36: #{a_call__.3} parent=31 // pred_fallthru
              _
            // Predicated region
            $region37: #{a_call__.3} parent=31 // pred_check
              _
            $region38: #{a_call__.3} parent=31 // pred_check_branch
              %160 = sbr.rel (0) target = $region40
            $region39: #{a_call__.3} parent=31 // pred_region
              %s162 = ssub.s32 16, 1
              loop: start=0, step=1, limit=1
              $region41: #{a_call__.3} parent=39 // loop_pre_header
                _
              $region42: #{a_call__.3} parent=39 // loop_header
                %s164 = sphi 0, %s168
                %p165 = scmp.ge.s32.totalorder %s164, 1
                %s169 = sphi %s154, %s154
                %s170 = sphi %s150, %s150
              $region43: #{a_call__.3} parent=39 // loop_header_branch
                %167 = sbr.rel (%p165) target = $region47
              $region44: #{a_call__.3} parent=39 // loop_body
                %v171 = vld [vmem:[%s169] sm:%s162]
                %172 = vst [vmem:[%s170] sm:%s162] %v171
                %v173 = vld [vmem:[%s169 + $0x8] sm:%s162]
                %174 = vst [vmem:[%s170 + $0x4] sm:%s162] %v173
                %v175 = vld [vmem:[%s169 + $0x10] sm:%s162]
                %176 = vst [vmem:[%s170 + $0x8] sm:%s162] %v175
                %v177 = vld [vmem:[%s169 + $0x18] sm:%s162]
                %178 = vst [vmem:[%s170 + $0xc] sm:%s162] %v177
                %v179 = vld [vmem:[%s169 + $0x20] sm:%s162]
                %180 = vst [vmem:[%s170 + $0x10] sm:%s162] %v179
                %v181 = vld [vmem:[%s169 + $0x28] sm:%s162]
                %182 = vst [vmem:[%s170 + $0x14] sm:%s162] %v181
                %v183 = vld [vmem:[%s169 + $0x30] sm:%s162]
                %184 = vst [vmem:[%s170 + $0x18] sm:%s162] %v183
                %v185 = vld [vmem:[%s169 + $0x38] sm:%s162]
                %186 = vst [vmem:[%s170 + $0x1c] sm:%s162] %v185
                %v187 = vld [vmem:[%s169 + $0x40] sm:%s162]
                %188 = vst [vmem:[%s170 + $0x20] sm:%s162] %v187
              $region45: #{a_call__.3} parent=39 // loop_footer
                %s168 = sadd.s32 1, %s164
              $region46: #{a_call__.3} parent=39 // loop_footer_branch
                %163 = sbr.rel target = $region42
              $region47: #{a_call__.3} parent=39 // loop_exit
                _
            $region40: #{a_call__.3} parent=31 // pred_fallthru
              _
          $region32: #{a_call__.3} parent=27 // pred_fallthru
            _
          %227 = vnop
        $region28: #{a_call__.3} parent=23 // pred_fallthru
          _
      $region24: #{a_call__.3} parent=5 // pred_fallthru
        _
      %p228 = scmp.le.s32.totalorder 1, %s9
      %p229 = scmp.lt.s32.totalorder %s9, 5
      %p230 = pnand %p228, %p229
      %p231 = pneg %p230
      // Predicated region
      $region66: #{a_call__.3} parent=5 // pred_check
        _
      $region67: #{a_call__.3} parent=5 // pred_check_branch
        %233 = sbr.rel (%p230) target = $region69
      $region68: #{a_call__.3} parent=5 // pred_region
        %s234 = ssub.s32 %s9, 1
        %s235 = sand.u32 %s36, 1
        %s236 = sand.u32 %s36, 1
        %s237 = smul.addr %s236, 36
        %s238 = scalar_lea.vmem [#allocation2], %s237
        // Predicated region
        $region70: #{a_call__.3} parent=68 // pred_check
          %p239 = pneg %p49
        $region71: #{a_call__.3} parent=68 // pred_check_branch
          %241 = sbr.rel (%p239) target = $region73
        $region72: #{a_call__.3} parent=68 // pred_region
          _
        $region73: #{a_call__.3} parent=68 // pred_fallthru
          _
        %s242 = sand.u32 %s36, 1
        %s243 = sand.u32 %s36, 1
        %s244 = smul.addr %s243, 36
        %s245 = scalar_lea.vmem [#allocation2], %s244
        %p246 = pneg %p49
        %p247 = pneg %p46
        %p248 = pneg %p70
        %p249 = pneg %p67
        %p250 = pneg %p91
        %p251 = pneg %p88
        %p252 = pneg %p119
        %p253 = pneg %p116
        %s254 = sand.u32 %s106, 1
        %s255 = sand.u32 %s106, 1
        %s256 = smul.addr %s255, 16
        %s257 = scalar_lea.vmem [#allocation3], %s256
        %v259 = vld [vmem:[%s1] sm:$0xf]
        %v260 = vld [vmem:[%s1 + $0x4] sm:$0xf]
        %v261 = vld [vmem:[%s238] sm:$0xf]
        %v262 = vld [vmem:[%s238 + $0x4] sm:$0xf]
        %v263 = vld [vmem:[%s238 + $0x8] sm:$0xf]
        %v264 = vld [vmem:[%s238 + $0xc] sm:$0xf]
        %v265 = vld [vmem:[%s238 + $0x10] sm:$0xf]
        %v266 = vld [vmem:[%s238 + $0x14] sm:$0xf]
        %v267 = vld [vmem:[%s238 + $0x18] sm:$0xf]
        %v268 = vld [vmem:[%s238 + $0x1c] sm:$0xf]
        %v269 = vld [vmem:[%s238 + $0x20] sm:$0xf]
        %v270 = vld [vmem:[%s2] sm:$0xff]
        %v271 = vld [vmem:[%s2 + $0x8] sm:$0xff]
        %273 = vset.pattern.permute.xlu0 0
        %274 = vperm.xlu0 %273, %v270
        %v275 = vpop.permute.xlu0 %274
        %278 = vset.pattern.permute.xlu0 0
        %279 = vperm.xlu0 %278, %v271
        %v280 = vpop.permute.xlu0 %279
        %v284 = vunpack.c.l.b16 %v259
        %v285 = vunpack.c.l.b16 %v260
        %v286 = vpack.c.b16 %v285, %v284
        %v296 = vunpack.c.l.b16 %v261
        %v297 = vunpack.c.l.b16 %v262
        %v298 = vunpack.c.l.b16 %v263
        %v299 = vunpack.c.l.b16 %v264
        %v300 = vunpack.c.l.b16 %v265
        %v301 = vunpack.c.l.b16 %v266
        %v302 = vunpack.c.l.b16 %v267
        %v303 = vunpack.c.l.b16 %v268
        %v304 = vunpack.c.l.b16 %v269
        %v305 = vpack.c.b16 %v297, %v296
        %v306 = vpack.c.b16 %v299, %v298
        %v307 = vpack.c.b16 %v301, %v300
        %v308 = vpack.c.b16 %v303, %v302
        %v309 = vpack.c.b16 %v304, %v304
        %vm314 = vcmask 588800
        %v316 = vsel %vm314, %v286, 0
        %vm318 = vcmask 1043456
        %v320 = vsel %vm318, %v309, 0
        %322 = vmatpush.bf16.msra.mxu0 0
        %323 = vmatpush.bf16.msra.mxu0 0
        %324 = vmatpush.bf16.msra.mxu0 0
        %325 = vmatpush.bf16.msra.mxu0 %v320
        %326 = vmatpush.bf16.msra.mxu0 %v308
        %327 = vmatpush.bf16.msra.mxu0 %v307
        %328 = vmatpush.bf16.msra.mxu0 %v306
        %329 = vmatpush.bf16.msra.mxu0 %v305
        %330 = vmatmul.bf16.gmra.mxu0 %v316
        %v331 = vpop.f32.mrf.mxu0
        %v332 = vadd.f32 %v275, %v331
        %v333 = vpop.f32.mrf.mxu0
        %v334 = vadd.f32 %v280, %v333
        %335 = vdwg.mxu0
        %v336 = vmax.f32 %v332, 0.0
        %v337 = vmax.f32 %v334, 0.0
        %338 = vst [vmem:[%s257] sm:$0xff] %v336
        %339 = vst [vmem:[%s257 + $0x8] sm:$0xff] %v337
        %s340 = sand.u32 %s106, 1
        %s341 = sand.u32 %s106, 1
        %s342 = smul.addr %s341, 16
        %s343 = scalar_lea.vmem [#allocation3], %s342
        // Predicated region
        $region74: #{a_call__.3} parent=68 // pred_check
          %p344 = pneg %p116
        $region75: #{a_call__.3} parent=68 // pred_check_branch
          %346 = sbr.rel (%p344) target = $region77
        $region76: #{a_call__.3} parent=68 // pred_region
          %s347 = smul.addr %s18, 4
          %s348 = sadd.s32 %s19, %s347
          %s349 = smul.addr %s348, 8
          %s350 = scalar_lea.vmem %s3, %s349
          // Predicated region
          $region78: #{a_call__.3} parent=76 // pred_check
            _
          $region79: #{a_call__.3} parent=76 // pred_check_branch
            %352 = sbr.rel (0) target = $region81
          $region80: #{a_call__.3} parent=76 // pred_region
            // Predicated region
            $region82: #{a_call__.3} parent=80 // pred_check
              _
            $region83: #{a_call__.3} parent=80 // pred_check_branch
              %354 = sbr.rel (0) target = $region85
            $region84: #{a_call__.3} parent=80 // pred_region
              // Predicated region
              $region97: #{a_call__.3} parent=84 // pred_check
                _
              $region98: #{a_call__.3} parent=84 // pred_check_branch
                %372 = sbr.rel (0) target = $region100
              $region99: #{a_call__.3} parent=84 // pred_region
                loop: start=0, step=1, limit=1
                $region101: #{a_call__.3} parent=99 // loop_pre_header
                  _
                $region102: #{a_call__.3} parent=99 // loop_header
                  %s374 = sphi 0, %s378
                  %p375 = scmp.ge.s32.totalorder %s374, 1
                  %s379 = sphi %s343, %s343
                  %s380 = sphi %s350, %s350
                $region103: #{a_call__.3} parent=99 // loop_header_branch
                  %377 = sbr.rel (%p375) target = $region107
                $region104: #{a_call__.3} parent=99 // loop_body
                  %v381 = vld [vmem:[%s379] sm:$0xff]
                  %382 = vst [vmem:[%s380] sm:$0xff] %v381
                  %v383 = vld [vmem:[%s379 + $0x8] sm:$0xff]
                  %384 = vst [vmem:[%s380 + $0x10] sm:$0xff] %v383
                $region105: #{a_call__.3} parent=99 // loop_footer
                  %s378 = sadd.s32 1, %s374
                $region106: #{a_call__.3} parent=99 // loop_footer_branch
                  %373 = sbr.rel target = $region102
                $region107: #{a_call__.3} parent=99 // loop_exit
                  _
              $region100: #{a_call__.3} parent=84 // pred_fallthru
                _
              // Predicated region
              $region108: #{a_call__.3} parent=84 // pred_check
                _
              $region109: #{a_call__.3} parent=84 // pred_check_branch
                %386 = sbr.rel target = $region111
              $region110: #{a_call__.3} parent=84 // pred_region
                _
              $region111: #{a_call__.3} parent=84 // pred_fallthru
                _
            $region85: #{a_call__.3} parent=80 // pred_fallthru
              _
            // Predicated region
            $region86: #{a_call__.3} parent=80 // pred_check
              _
            $region87: #{a_call__.3} parent=80 // pred_check_branch
              %356 = sbr.rel target = $region89
            $region88: #{a_call__.3} parent=80 // pred_region
              %s358 = ssub.s32 256, 1
              loop: start=0, step=1, limit=1
              $region90: #{a_call__.3} parent=88 // loop_pre_header
                _
              $region91: #{a_call__.3} parent=88 // loop_header
                %s360 = sphi 0, %s364
                %p361 = scmp.ge.s32.totalorder %s360, 1
                %s365 = sphi %s343, %s343
                %s366 = sphi %s350, %s350
              $region92: #{a_call__.3} parent=88 // loop_header_branch
                %363 = sbr.rel (%p361) target = $region96
              $region93: #{a_call__.3} parent=88 // loop_body
                %v367 = vld [vmem:[%s365] sm:%s358]
                %368 = vst [vmem:[%s366] sm:%s358] %v367
                %v369 = vld [vmem:[%s365 + $0x8] sm:%s358]
                %370 = vst [vmem:[%s366 + $0x10] sm:%s358] %v369
              $region94: #{a_call__.3} parent=88 // loop_footer
                %s364 = sadd.s32 1, %s360
              $region95: #{a_call__.3} parent=88 // loop_footer_branch
                %359 = sbr.rel target = $region91
              $region96: #{a_call__.3} parent=88 // loop_exit
                _
            $region89: #{a_call__.3} parent=80 // pred_fallthru
              _
          $region81: #{a_call__.3} parent=76 // pred_fallthru
            _
          %387 = vnop
        $region77: #{a_call__.3} parent=68 // pred_fallthru
          _
      $region69: #{a_call__.3} parent=5 // pred_fallthru
        _
      %p388 = scmp.le.s32.totalorder 2, %s9
      // Predicated region
      $region112: #{a_call__.3} parent=5 // pred_check
        %p389 = pneg %p388
      $region113: #{a_call__.3} parent=5 // pred_check_branch
        %391 = sbr.rel (%p389) target = $region115
      $region114: #{a_call__.3} parent=5 // pred_region
        %s392 = ssub.s32 %s9, 2
        // Predicated region
        $region116: #{a_call__.3} parent=114 // pred_check
          %p393 = pneg %p122
        $region117: #{a_call__.3} parent=114 // pred_check_branch
          %395 = sbr.rel (%p393) target = $region119
        $region118: #{a_call__.3} parent=114 // pred_region
          %s396 = sand.u32 %s107, 1
          %s397 = sand.u32 %s107, 1
          %s398 = smul.addr %s397, 16
          %s399 = scalar_lea.vmem [#allocation3], %s398
        $region119: #{a_call__.3} parent=114 // pred_fallthru
          _
      $region115: #{a_call__.3} parent=5 // pred_fallthru
        _
    $region6: #{a_call__.3} parent=1 // loop_footer
      %s13 = sadd.s32 1, %s9
    $region7: #{a_call__.3} parent=1 // loop_footer_branch
      %8 = sbr.rel target = $region3
    $region8: #{a_call__.3} parent=1 // loop_exit
      _

</llo_original>
